<compile_context>
chip_gen: v7x
topology: tpu7x:2x2x1
jax: 0.10.0
libtpu: 0.0.40
codegen_flags: <defaults>
</compile_context>

<pallas_src>
import functools

import jax
import jax.numpy as jnp
from jax import lax
from jax.experimental import pallas as pl
from jax.experimental.pallas import tpu as pltpu

# Fixed Sobel kernels (same constants as the PyTorch module __init__).
_KX = ((-1.0, 0.0, 1.0),
       (-2.0, 0.0, 2.0),
       (-1.0, 0.0, 1.0))
_KY = (( 1.0,  2.0,  1.0),
       ( 0.0,  0.0,  0.0),
       (-1.0, -2.0, -1.0))


def _hpass(x, W):
    """Horizontal (lane-dim) separable Sobel passes with zero column padding.

    Returns (dx, sx) with dx[r,c] = x[r,c+1] - x[r,c-1]   (row filter [-1,0,1])
    and      sx[r,c] = x[r,c-1] + 2*x[r,c] + x[r,c+1]     (row filter [ 1,2,1])
    using zero padding at c = -1 and c = W.

    Static-slice concatenation keeps the +/-1 lane-shift semantics exact;
    pltpu.roll would keep the shift on the XLU but its wrap column needs an
    extra select anyway, so the concat form is kept for unambiguous padding.
    """
    R = x.shape[0]
    zcol = jnp.zeros((R, 1), jnp.float32)
    left = jnp.concatenate([zcol, x[:, :W - 1]], axis=1)    # x[r, c-1]
    right = jnp.concatenate([x[:, 1:], zcol], axis=1)       # x[r, c+1]
    return right - left, left + 2.0 * x + right


def _sobel_loss_kernel(x1_ref, x2_ref, xg_ref, h1_ref, h2_ref, hg_ref,
                       out_ref, *, TR, W, H, nb, HALO, ragged):
    """Grid point (n, i): one (TR, W) row slab of each image -> (1,1) partial.

    Output rows evaluated at step i are global rows [i*TR-1, i*TR+TR-2]
    (k = 0..TR-1) plus, when H % TR == 0, an extra row k = TR (global row
    i*TR+TR-1) counted only on the last slab (bottom zero padding).  The
    phantom row k = 0 on the first slab (global row -1) is excluded from the
    sum.  The 2-row top halo (global rows i*TR-2, i*TR-1) is re-read from HBM
    via the hX_refs (last 2 of HALO rows); it is zeroed when i == 0 (top zero
    padding).
    """
    i = pl.program_id(1)
    halo_valid = i > 0

    if ragged:
        # Valid input rows in this slab (last slab may be partial).
        r_valid = jnp.minimum(H - i * TR, TR)
        row = lax.broadcasted_iota(jnp.int32, (TR, W), 0)
        row_keep = row < r_valid
    else:
        row_keep = None

    def tile(x_ref, h_ref):
        x = x_ref[...].astype(jnp.float32)                    # (TR, W)
        if ragged:
            # Zero OOB rows of the (possibly partial) last slab; doubles as
            # the bottom zero padding for the last real image row.
            x = jnp.where(row_keep, x, 0.0)
        dx, sx = _hpass(x, W)

        halo = h_ref[HALO - 2:HALO, :].astype(jnp.float32)    # rows i*TR-2, i*TR-1
        halo = jnp.where(halo_valid, halo, 0.0)               # top zero padding
        dxh, sxh = _hpass(halo, W)

        # Output row k = 0 (global row i*TR - 1; phantom when i == 0).
        g0 = (jnp.abs(dxh[0:1] + 2.0 * dxh[1:2] + dx[0:1])
              + jnp.abs(sxh[0:1] - sx[0:1]))
        # Output row k = 1 (global row i*TR).
        g1 = (jnp.abs(dxh[1:2] + 2.0 * dx[0:1] + dx[1:2])
              + jnp.abs(sxh[1:2] - sx[1:2]))
        # Bulk output rows k = 2..TR-1 (global rows i*TR+1 .. i*TR+TR-2).
        gb = (jnp.abs(dx[0:TR - 2] + 2.0 * dx[1:TR - 1] + dx[2:TR])
              + jnp.abs(sx[0:TR - 2] - sx[2:TR]))
        # Extra output row k = TR (global row i*TR+TR-1, zero padding below);
        # only needed when H % TR == 0 and i == nb - 1 (statically skipped
        # otherwise -- a ragged last slab covers row H-1 inside the bulk).
        ge = None
        if not ragged:
            ge = (jnp.abs(dx[TR - 2:TR - 1] + 2.0 * dx[TR - 1:TR])
                  + jnp.abs(sx[TR - 2:TR - 1]))
        return g0, g1, gb, ge

    a0, a1, ab, ae = tile(x1_ref, h1_ref)
    b0, b1, bb, be = tile(x2_ref, h2_ref)
    c0, c1, cb, ce = tile(xg_ref, hg_ref)

    db = jnp.abs(jnp.maximum(ab, bb) - cb)                    # (TR-2, W)
    d1 = jnp.abs(jnp.maximum(a1, b1) - c1)                    # (1, W)
    d0 = jnp.abs(jnp.maximum(a0, b0) - c0)                    # (1, W)

    if ragged:
        # Bulk row k = j+2 is a real image row iff k <= H - i*TR.
        brow = lax.broadcasted_iota(jnp.int32, (TR - 2, W), 0)
        db = jnp.where(brow <= (H - i * TR - 2), db, 0.0)

    part = jnp.sum(db, keepdims=True) + jnp.sum(d1, keepdims=True)
    part = part + jnp.where(halo_valid, jnp.sum(d0, keepdims=True), 0.0)
    if not ragged:
        de = jnp.abs(jnp.maximum(ae, be) - ce)                # (1, W)
        part = part + jnp.where(i == nb - 1,
                                jnp.sum(de, keepdims=True), 0.0)
    out_ref[...] = part


def _pick_row_tile(H, W, target_bytes=2 << 20):
    """Row-slab height: full H if it fits ~target_bytes (f32), else a multiple
    of 8 (ragged last slab is handled in-kernel)."""
    max_rows = max(8, target_bytes // (W * 4))
    if H <= max_rows:
        return H
    return max(8, (max_rows // 8) * 8)


def sobel_loss1(image_1, image_2, generate_img, *,
                reduction='mean', loss_weight=1.0, row_block=None):
    """JAX/Pallas equivalent of SobelLoss1.forward (NCHW inputs, C == 1)."""
    image_1 = jnp.asarray(image_1)
    image_2 = jnp.asarray(image_2)
    generate_img = jnp.asarray(generate_img)
    assert image_1.shape == image_2.shape == generate_img.shape
    assert image_1.dtype == image_2.dtype == generate_img.dtype
    N, C, H, W = image_1.shape
    assert C == 1, "Sobelxy conv weight has in_channels=1"
    assert H >= 3, "row-slab decomposition assumes H >= 3"
    if reduction not in ('mean', 'sum'):
        # TODO(synk): reduction='none' (per-element map) is not supported.
        raise ValueError("only reduction in {'mean','sum'} is supported")

    if row_block is None:
        TR = _pick_row_tile(H, W)
    else:
        TR = int(row_block)
        assert (TR == H) or (TR % 8 == 0 and 8 <= TR <= H), "bad row_block"
    assert TR >= 3
    nb = pl.cdiv(H, TR)
    ragged = (H % TR) != 0
    HALO = 8 if H >= 8 else H            # halo block rows (>= 2, 8-aligned)
    hb = max(TR // HALO, 1)              # halo blocks per slab (exact if nb>1)

    kernel = functools.partial(_sobel_loss_kernel, TR=TR, W=W, H=H, nb=nb,
                               HALO=HALO, ragged=ragged)

    itemsize = jnp.dtype(image_1.dtype).itemsize
    # Scoped-VMEM cap: generous for the f32 compute temps, well under v7x's
    # 64 MiB physical VMEM (v5e/v6e have 128 MiB).
    vmem_limit = 48 << 20

    slab_spec = pl.BlockSpec((None, None, TR, W), lambda n, i: (n, 0, i, 0))
    halo_spec = pl.BlockSpec(
        (None, None, HALO, W),
        lambda n, i: (n, 0, jnp.maximum(i * hb - 1, 0), 0))

    cost = pl.CostEstimate(
        flops=52 * N * H * W,
        transcendentals=0,
        bytes_accessed=(3 * N * H * W * itemsize            # image slabs
                        + 3 * N * nb * HALO * W * itemsize  # halo re-reads
                        + N * nb * 4))                      # partial sums

    partials = pl.pallas_call(
        kernel,
        out_shape=jax.ShapeDtypeStruct((N, nb, 1, 1), jnp.float32),
        grid_spec=pltpu.PrefetchScalarGridSpec(
            num_scalar_prefetch=0,
            grid=(N, nb),
            in_specs=[slab_spec, slab_spec, slab_spec,
                      halo_spec, halo_spec, halo_spec],
            out_specs=pl.BlockSpec((None, None, 1, 1),
                                   lambda n, i: (n, i, 0, 0)),
        ),
        compiler_params=pltpu.CompilerParams(
            dimension_semantics=("parallel", "parallel"),
            vmem_limit_bytes=vmem_limit,
        ),
        cost_estimate=cost,
    )(image_1, image_2, generate_img, image_1, image_2, generate_img)

    total = jnp.sum(partials)            # tiny (N, nb) reduction in the wrapper
    if reduction == 'mean':
        total = total / float(N * C * H * W)
    return total * float(loss_weight)


def _sobel_loss1_ref(image_1, image_2, generate_img, *,
                     reduction='mean', loss_weight=1.0):
    """Pure-JAX reference for correctness checking."""
    kx = jnp.array(_KX, jnp.float32)
    ky = jnp.array(_KY, jnp.float32)

    def grad(x):
        x = jnp.asarray(x, jnp.float32)[:, 0]
        xp = jnp.pad(x, ((0, 0), (1, 1), (1, 1)))
        N, H, W = x.shape
        gx = jnp.zeros_like(x)
        gy = jnp.zeros_like(x)
        for di in range(3):
            for dj in range(3):
                win = xp[:, di:di + H, dj:dj + W]
                gx = gx + kx[di, dj] * win
                gy = gy + ky[di, dj] * win
        return jnp.abs(gx) + jnp.abs(gy)

    g1, g2, gg = grad(image_1), grad(image_2), grad(generate_img)
    diff = jnp.abs(jnp.maximum(g1, g2) - gg)
    loss = jnp.mean(diff) if reduction == 'mean' else jnp.sum(diff)
    return loss * loss_weight


if __name__ == "__main__":
    key = jax.random.PRNGKey(0)
    k1, k2, k3 = jax.random.split(key, 3)
    shape = (2, 1, 16, 16)  # NCHW, single channel (required by Sobelxy)
    image_1 = jax.random.uniform(k1, shape, jnp.float32)
    image_2 = jax.random.uniform(k2, shape, jnp.float32)
    generate_img = jax.random.uniform(k3, shape, jnp.float32)

    ref = jax.block_until_ready(
        _sobel_loss1_ref(image_1, image_2, generate_img,
                         reduction='mean', loss_weight=1.0))

    def _check(got, want):
        assert abs(float(got) - float(want)) < 1e-4 * max(1.0, abs(float(want))), (
            float(got), float(want))

    # Default (single row slab per image for this small demo shape).
    loss = jax.block_until_ready(
        sobel_loss1(image_1, image_2, generate_img,
                    reduction='mean', loss_weight=1.0))
    _check(loss, ref)

    # Multi-slab path (halo re-read across row-slab boundaries).
    loss2 = jax.block_until_ready(
        sobel_loss1(image_1, image_2, generate_img,
                    reduction='mean', loss_weight=1.0, row_block=8))
    _check(loss2, ref)

    # Ragged last row slab (H % row_block != 0), masked in-kernel.
    shape_r = (1, 1, 20, 16)
    r1 = jax.random.uniform(k1, shape_r, jnp.float32)
    r2 = jax.random.uniform(k2, shape_r, jnp.float32)
    rg = jax.random.uniform(k3, shape_r, jnp.float32)
    ref_r = jax.block_until_ready(
        _sobel_loss1_ref(r1, r2, rg, reduction='mean', loss_weight=1.0))
    loss_r = jax.block_until_ready(
        sobel_loss1(r1, r2, rg, reduction='mean', loss_weight=1.0, row_block=8))
    _check(loss_r, ref_r)

    print("KERNEL_OK")
</pallas_src>

<mosaic_0001>
module attributes {stable_mosaic.version = 11 : i64} {
  func.func @_sobel_loss_kernel(%arg0: i32, %arg1: i32, %arg2: memref<1x1x16x16xf32, #tpu.memory_space<vmem>>, %arg3: memref<1x1x16x16xf32, #tpu.memory_space<vmem>>, %arg4: memref<1x1x16x16xf32, #tpu.memory_space<vmem>>, %arg5: memref<1x1x8x16xf32, #tpu.memory_space<vmem>>, %arg6: memref<1x1x8x16xf32, #tpu.memory_space<vmem>>, %arg7: memref<1x1x8x16xf32, #tpu.memory_space<vmem>>, %arg8: memref<1x1x1x1xf32, #tpu.memory_space<vmem>>) attributes {dimension_semantics = [#tpu.dimension_semantics<parallel>, #tpu.dimension_semantics<parallel>], iteration_bounds = array<i64: 2, 1>, scalar_prefetch = 0 : i64, scratch_operands = 0 : i64, tpu.core_type = #tpu.core_type<tc>, window_params = [{transform_indices = @transform_0, window_bounds = array<i64: 1, 1, 16, 16>}, {transform_indices = @transform_1, window_bounds = array<i64: 1, 1, 16, 16>}, {transform_indices = @transform_2, window_bounds = array<i64: 1, 1, 16, 16>}, {transform_indices = @transform_3, window_bounds = array<i64: 1, 1, 8, 16>}, {transform_indices = @transform_4, window_bounds = array<i64: 1, 1, 8, 16>}, {transform_indices = @transform_5, window_bounds = array<i64: 1, 1, 8, 16>}, {transform_indices = @transform_6, window_bounds = array<i64: 1, 1, 1, 1>}]} {
    %c0_i32 = arith.constant 0 : i32
    %0 = arith.cmpi sgt, %arg1, %c0_i32 : i32
    %c0 = arith.constant 0 : index
    %c0_0 = arith.constant 0 : index
    %c0_1 = arith.constant 0 : index
    %c0_2 = arith.constant 0 : index
    %1 = vector.load %arg2[%c0, %c0_0, %c0_1, %c0_2] : memref<1x1x16x16xf32, #tpu.memory_space<vmem>>, vector<1x1x16x16xf32>
    %2 = vector.shape_cast %1 : vector<1x1x16x16xf32> to vector<16x16xf32>
    %cst = arith.constant 0.000000e+00 : f32
    %3 = vector.broadcast %cst : f32 to vector<16x1xf32>
    %4 = vector.extract_strided_slice %2 {offsets = [0, 0], sizes = [16, 15], strides = [1, 1]} : vector<16x16xf32> to vector<16x15xf32>
    %5 = tpu.concatenate %3, %4 in 1 : vector<16x1xf32>, vector<16x15xf32> -> vector<16x16xf32>
    %6 = vector.extract_strided_slice %2 {offsets = [0, 1], sizes = [16, 15], strides = [1, 1]} : vector<16x16xf32> to vector<16x15xf32>
    %7 = tpu.concatenate %6, %3 in 1 : vector<16x15xf32>, vector<16x1xf32> -> vector<16x16xf32>
    %8 = arith.subf %7, %5 : vector<16x16xf32>
    %cst_3 = arith.constant 2.000000e+00 : f32
    %9 = vector.broadcast %cst_3 : f32 to vector<16x16xf32>
    %10 = arith.mulf %9, %2 : vector<16x16xf32>
    %11 = arith.addf %5, %10 : vector<16x16xf32>
    %12 = arith.addf %11, %7 : vector<16x16xf32>
    %c0_4 = arith.constant 0 : index
    %c0_5 = arith.constant 0 : index
    %c6 = arith.constant 6 : index
    %c0_6 = arith.constant 0 : index
    %13 = vector.load %arg5[%c0_4, %c0_5, %c6, %c0_6] : memref<1x1x8x16xf32, #tpu.memory_space<vmem>>, vector<1x1x2x16xf32>
    %14 = vector.shape_cast %13 : vector<1x1x2x16xf32> to vector<2x16xf32>
    %cst_7 = arith.constant 0.000000e+00 : f32
    %15 = vector.broadcast %cst_7 : f32 to vector<2x16xf32>
    %16 = arith.select %0, %14, %15 : vector<2x16xf32>
    %cst_8 = arith.constant 0.000000e+00 : f32
    %17 = vector.broadcast %cst_8 : f32 to vector<2x1xf32>
    %18 = vector.extract_strided_slice %16 {offsets = [0, 0], sizes = [2, 15], strides = [1, 1]} : vector<2x16xf32> to vector<2x15xf32>
    %19 = tpu.concatenate %17, %18 in 1 : vector<2x1xf32>, vector<2x15xf32> -> vector<2x16xf32>
    %20 = vector.extract_strided_slice %16 {offsets = [0, 1], sizes = [2, 15], strides = [1, 1]} : vector<2x16xf32> to vector<2x15xf32>
    %21 = tpu.concatenate %20, %17 in 1 : vector<2x15xf32>, vector<2x1xf32> -> vector<2x16xf32>
    %22 = arith.subf %21, %19 : vector<2x16xf32>
    %cst_9 = arith.constant 2.000000e+00 : f32
    %23 = vector.broadcast %cst_9 : f32 to vector<2x16xf32>
    %24 = arith.mulf %23, %16 : vector<2x16xf32>
    %25 = arith.addf %19, %24 : vector<2x16xf32>
    %26 = arith.addf %25, %21 : vector<2x16xf32>
    %27 = vector.extract_strided_slice %22 {offsets = [0, 0], sizes = [1, 16], strides = [1, 1]} : vector<2x16xf32> to vector<1x16xf32>
    %28 = vector.extract_strided_slice %22 {offsets = [1, 0], sizes = [1, 16], strides = [1, 1]} : vector<2x16xf32> to vector<1x16xf32>
    %cst_10 = arith.constant 2.000000e+00 : f32
    %29 = vector.broadcast %cst_10 : f32 to vector<1x16xf32>
    %30 = arith.mulf %29, %28 : vector<1x16xf32>
    %31 = arith.addf %27, %30 : vector<1x16xf32>
    %32 = vector.extract_strided_slice %8 {offsets = [0, 0], sizes = [1, 16], strides = [1, 1]} : vector<16x16xf32> to vector<1x16xf32>
    %33 = arith.addf %31, %32 : vector<1x16xf32>
    %34 = math.absf %33 : vector<1x16xf32>
    %35 = vector.extract_strided_slice %26 {offsets = [0, 0], sizes = [1, 16], strides = [1, 1]} : vector<2x16xf32> to vector<1x16xf32>
    %36 = vector.extract_strided_slice %12 {offsets = [0, 0], sizes = [1, 16], strides = [1, 1]} : vector<16x16xf32> to vector<1x16xf32>
    %37 = arith.subf %35, %36 : vector<1x16xf32>
    %38 = math.absf %37 : vector<1x16xf32>
    %39 = arith.addf %34, %38 : vector<1x16xf32>
    %40 = vector.extract_strided_slice %22 {offsets = [1, 0], sizes = [1, 16], strides = [1, 1]} : vector<2x16xf32> to vector<1x16xf32>
    %41 = vector.extract_strided_slice %8 {offsets = [0, 0], sizes = [1, 16], strides = [1, 1]} : vector<16x16xf32> to vector<1x16xf32>
    %cst_11 = arith.constant 2.000000e+00 : f32
    %42 = vector.broadcast %cst_11 : f32 to vector<1x16xf32>
    %43 = arith.mulf %42, %41 : vector<1x16xf32>
    %44 = arith.addf %40, %43 : vector<1x16xf32>
    %45 = vector.extract_strided_slice %8 {offsets = [1, 0], sizes = [1, 16], strides = [1, 1]} : vector<16x16xf32> to vector<1x16xf32>
    %46 = arith.addf %44, %45 : vector<1x16xf32>
    %47 = math.absf %46 : vector<1x16xf32>
    %48 = vector.extract_strided_slice %26 {offsets = [1, 0], sizes = [1, 16], strides = [1, 1]} : vector<2x16xf32> to vector<1x16xf32>
    %49 = vector.extract_strided_slice %12 {offsets = [1, 0], sizes = [1, 16], strides = [1, 1]} : vector<16x16xf32> to vector<1x16xf32>
    %50 = arith.subf %48, %49 : vector<1x16xf32>
    %51 = math.absf %50 : vector<1x16xf32>
    %52 = arith.addf %47, %51 : vector<1x16xf32>
    %53 = vector.extract_strided_slice %8 {offsets = [0, 0], sizes = [14, 16], strides = [1, 1]} : vector<16x16xf32> to vector<14x16xf32>
    %54 = vector.extract_strided_slice %8 {offsets = [1, 0], sizes = [14, 16], strides = [1, 1]} : vector<16x16xf32> to vector<14x16xf32>
    %cst_12 = arith.constant 2.000000e+00 : f32
    %55 = vector.broadcast %cst_12 : f32 to vector<14x16xf32>
    %56 = arith.mulf %55, %54 : vector<14x16xf32>
    %57 = arith.addf %53, %56 : vector<14x16xf32>
    %58 = vector.extract_strided_slice %8 {offsets = [2, 0], sizes = [14, 16], strides = [1, 1]} : vector<16x16xf32> to vector<14x16xf32>
    %59 = arith.addf %57, %58 : vector<14x16xf32>
    %60 = math.absf %59 : vector<14x16xf32>
    %61 = vector.extract_strided_slice %12 {offsets = [0, 0], sizes = [14, 16], strides = [1, 1]} : vector<16x16xf32> to vector<14x16xf32>
    %62 = vector.extract_strided_slice %12 {offsets = [2, 0], sizes = [14, 16], strides = [1, 1]} : vector<16x16xf32> to vector<14x16xf32>
    %63 = arith.subf %61, %62 : vector<14x16xf32>
    %64 = math.absf %63 : vector<14x16xf32>
    %65 = arith.addf %60, %64 : vector<14x16xf32>
    %66 = vector.extract_strided_slice %8 {offsets = [14, 0], sizes = [1, 16], strides = [1, 1]} : vector<16x16xf32> to vector<1x16xf32>
    %67 = vector.extract_strided_slice %8 {offsets = [15, 0], sizes = [1, 16], strides = [1, 1]} : vector<16x16xf32> to vector<1x16xf32>
    %cst_13 = arith.constant 2.000000e+00 : f32
    %68 = vector.broadcast %cst_13 : f32 to vector<1x16xf32>
    %69 = arith.mulf %68, %67 : vector<1x16xf32>
    %70 = arith.addf %66, %69 : vector<1x16xf32>
    %71 = math.absf %70 : vector<1x16xf32>
    %72 = vector.extract_strided_slice %12 {offsets = [14, 0], sizes = [1, 16], strides = [1, 1]} : vector<16x16xf32> to vector<1x16xf32>
    %73 = math.absf %72 : vector<1x16xf32>
    %74 = arith.addf %71, %73 : vector<1x16xf32>
    %c0_14 = arith.constant 0 : index
    %c0_15 = arith.constant 0 : index
    %c0_16 = arith.constant 0 : index
    %c0_17 = arith.constant 0 : index
    %75 = vector.load %arg3[%c0_14, %c0_15, %c0_16, %c0_17] : memref<1x1x16x16xf32, #tpu.memory_space<vmem>>, vector<1x1x16x16xf32>
    %76 = vector.shape_cast %75 : vector<1x1x16x16xf32> to vector<16x16xf32>
    %cst_18 = arith.constant 0.000000e+00 : f32
    %77 = vector.broadcast %cst_18 : f32 to vector<16x1xf32>
    %78 = vector.extract_strided_slice %76 {offsets = [0, 0], sizes = [16, 15], strides = [1, 1]} : vector<16x16xf32> to vector<16x15xf32>
    %79 = tpu.concatenate %77, %78 in 1 : vector<16x1xf32>, vector<16x15xf32> -> vector<16x16xf32>
    %80 = vector.extract_strided_slice %76 {offsets = [0, 1], sizes = [16, 15], strides = [1, 1]} : vector<16x16xf32> to vector<16x15xf32>
    %81 = tpu.concatenate %80, %77 in 1 : vector<16x15xf32>, vector<16x1xf32> -> vector<16x16xf32>
    %82 = arith.subf %81, %79 : vector<16x16xf32>
    %cst_19 = arith.constant 2.000000e+00 : f32
    %83 = vector.broadcast %cst_19 : f32 to vector<16x16xf32>
    %84 = arith.mulf %83, %76 : vector<16x16xf32>
    %85 = arith.addf %79, %84 : vector<16x16xf32>
    %86 = arith.addf %85, %81 : vector<16x16xf32>
    %c0_20 = arith.constant 0 : index
    %c0_21 = arith.constant 0 : index
    %c6_22 = arith.constant 6 : index
    %c0_23 = arith.constant 0 : index
    %87 = vector.load %arg6[%c0_20, %c0_21, %c6_22, %c0_23] : memref<1x1x8x16xf32, #tpu.memory_space<vmem>>, vector<1x1x2x16xf32>
    %88 = vector.shape_cast %87 : vector<1x1x2x16xf32> to vector<2x16xf32>
    %cst_24 = arith.constant 0.000000e+00 : f32
    %89 = vector.broadcast %cst_24 : f32 to vector<2x16xf32>
    %90 = arith.select %0, %88, %89 : vector<2x16xf32>
    %cst_25 = arith.constant 0.000000e+00 : f32
    %91 = vector.broadcast %cst_25 : f32 to vector<2x1xf32>
    %92 = vector.extract_strided_slice %90 {offsets = [0, 0], sizes = [2, 15], strides = [1, 1]} : vector<2x16xf32> to vector<2x15xf32>
    %93 = tpu.concatenate %91, %92 in 1 : vector<2x1xf32>, vector<2x15xf32> -> vector<2x16xf32>
    %94 = vector.extract_strided_slice %90 {offsets = [0, 1], sizes = [2, 15], strides = [1, 1]} : vector<2x16xf32> to vector<2x15xf32>
    %95 = tpu.concatenate %94, %91 in 1 : vector<2x15xf32>, vector<2x1xf32> -> vector<2x16xf32>
    %96 = arith.subf %95, %93 : vector<2x16xf32>
    %cst_26 = arith.constant 2.000000e+00 : f32
    %97 = vector.broadcast %cst_26 : f32 to vector<2x16xf32>
    %98 = arith.mulf %97, %90 : vector<2x16xf32>
    %99 = arith.addf %93, %98 : vector<2x16xf32>
    %100 = arith.addf %99, %95 : vector<2x16xf32>
    %101 = vector.extract_strided_slice %96 {offsets = [0, 0], sizes = [1, 16], strides = [1, 1]} : vector<2x16xf32> to vector<1x16xf32>
    %102 = vector.extract_strided_slice %96 {offsets = [1, 0], sizes = [1, 16], strides = [1, 1]} : vector<2x16xf32> to vector<1x16xf32>
    %cst_27 = arith.constant 2.000000e+00 : f32
    %103 = vector.broadcast %cst_27 : f32 to vector<1x16xf32>
    %104 = arith.mulf %103, %102 : vector<1x16xf32>
    %105 = arith.addf %101, %104 : vector<1x16xf32>
    %106 = vector.extract_strided_slice %82 {offsets = [0, 0], sizes = [1, 16], strides = [1, 1]} : vector<16x16xf32> to vector<1x16xf32>
    %107 = arith.addf %105, %106 : vector<1x16xf32>
    %108 = math.absf %107 : vector<1x16xf32>
    %109 = vector.extract_strided_slice %100 {offsets = [0, 0], sizes = [1, 16], strides = [1, 1]} : vector<2x16xf32> to vector<1x16xf32>
    %110 = vector.extract_strided_slice %86 {offsets = [0, 0], sizes = [1, 16], strides = [1, 1]} : vector<16x16xf32> to vector<1x16xf32>
    %111 = arith.subf %109, %110 : vector<1x16xf32>
    %112 = math.absf %111 : vector<1x16xf32>
    %113 = arith.addf %108, %112 : vector<1x16xf32>
    %114 = vector.extract_strided_slice %96 {offsets = [1, 0], sizes = [1, 16], strides = [1, 1]} : vector<2x16xf32> to vector<1x16xf32>
    %115 = vector.extract_strided_slice %82 {offsets = [0, 0], sizes = [1, 16], strides = [1, 1]} : vector<16x16xf32> to vector<1x16xf32>
    %cst_28 = arith.constant 2.000000e+00 : f32
    %116 = vector.broadcast %cst_28 : f32 to vector<1x16xf32>
    %117 = arith.mulf %116, %115 : vector<1x16xf32>
    %118 = arith.addf %114, %117 : vector<1x16xf32>
    %119 = vector.extract_strided_slice %82 {offsets = [1, 0], sizes = [1, 16], strides = [1, 1]} : vector<16x16xf32> to vector<1x16xf32>
    %120 = arith.addf %118, %119 : vector<1x16xf32>
    %121 = math.absf %120 : vector<1x16xf32>
    %122 = vector.extract_strided_slice %100 {offsets = [1, 0], sizes = [1, 16], strides = [1, 1]} : vector<2x16xf32> to vector<1x16xf32>
    %123 = vector.extract_strided_slice %86 {offsets = [1, 0], sizes = [1, 16], strides = [1, 1]} : vector<16x16xf32> to vector<1x16xf32>
    %124 = arith.subf %122, %123 : vector<1x16xf32>
    %125 = math.absf %124 : vector<1x16xf32>
    %126 = arith.addf %121, %125 : vector<1x16xf32>
    %127 = vector.extract_strided_slice %82 {offsets = [0, 0], sizes = [14, 16], strides = [1, 1]} : vector<16x16xf32> to vector<14x16xf32>
    %128 = vector.extract_strided_slice %82 {offsets = [1, 0], sizes = [14, 16], strides = [1, 1]} : vector<16x16xf32> to vector<14x16xf32>
    %cst_29 = arith.constant 2.000000e+00 : f32
    %129 = vector.broadcast %cst_29 : f32 to vector<14x16xf32>
    %130 = arith.mulf %129, %128 : vector<14x16xf32>
    %131 = arith.addf %127, %130 : vector<14x16xf32>
    %132 = vector.extract_strided_slice %82 {offsets = [2, 0], sizes = [14, 16], strides = [1, 1]} : vector<16x16xf32> to vector<14x16xf32>
    %133 = arith.addf %131, %132 : vector<14x16xf32>
    %134 = math.absf %133 : vector<14x16xf32>
    %135 = vector.extract_strided_slice %86 {offsets = [0, 0], sizes = [14, 16], strides = [1, 1]} : vector<16x16xf32> to vector<14x16xf32>
    %136 = vector.extract_strided_slice %86 {offsets = [2, 0], sizes = [14, 16], strides = [1, 1]} : vector<16x16xf32> to vector<14x16xf32>
    %137 = arith.subf %135, %136 : vector<14x16xf32>
    %138 = math.absf %137 : vector<14x16xf32>
    %139 = arith.addf %134, %138 : vector<14x16xf32>
    %140 = vector.extract_strided_slice %82 {offsets = [14, 0], sizes = [1, 16], strides = [1, 1]} : vector<16x16xf32> to vector<1x16xf32>
    %141 = vector.extract_strided_slice %82 {offsets = [15, 0], sizes = [1, 16], strides = [1, 1]} : vector<16x16xf32> to vector<1x16xf32>
    %cst_30 = arith.constant 2.000000e+00 : f32
    %142 = vector.broadcast %cst_30 : f32 to vector<1x16xf32>
    %143 = arith.mulf %142, %141 : vector<1x16xf32>
    %144 = arith.addf %140, %143 : vector<1x16xf32>
    %145 = math.absf %144 : vector<1x16xf32>
    %146 = vector.extract_strided_slice %86 {offsets = [14, 0], sizes = [1, 16], strides = [1, 1]} : vector<16x16xf32> to vector<1x16xf32>
    %147 = math.absf %146 : vector<1x16xf32>
    %148 = arith.addf %145, %147 : vector<1x16xf32>
    %c0_31 = arith.constant 0 : index
    %c0_32 = arith.constant 0 : index
    %c0_33 = arith.constant 0 : index
    %c0_34 = arith.constant 0 : index
    %149 = vector.load %arg4[%c0_31, %c0_32, %c0_33, %c0_34] : memref<1x1x16x16xf32, #tpu.memory_space<vmem>>, vector<1x1x16x16xf32>
    %150 = vector.shape_cast %149 : vector<1x1x16x16xf32> to vector<16x16xf32>
    %cst_35 = arith.constant 0.000000e+00 : f32
    %151 = vector.broadcast %cst_35 : f32 to vector<16x1xf32>
    %152 = vector.extract_strided_slice %150 {offsets = [0, 0], sizes = [16, 15], strides = [1, 1]} : vector<16x16xf32> to vector<16x15xf32>
    %153 = tpu.concatenate %151, %152 in 1 : vector<16x1xf32>, vector<16x15xf32> -> vector<16x16xf32>
    %154 = vector.extract_strided_slice %150 {offsets = [0, 1], sizes = [16, 15], strides = [1, 1]} : vector<16x16xf32> to vector<16x15xf32>
    %155 = tpu.concatenate %154, %151 in 1 : vector<16x15xf32>, vector<16x1xf32> -> vector<16x16xf32>
    %156 = arith.subf %155, %153 : vector<16x16xf32>
    %cst_36 = arith.constant 2.000000e+00 : f32
    %157 = vector.broadcast %cst_36 : f32 to vector<16x16xf32>
    %158 = arith.mulf %157, %150 : vector<16x16xf32>
    %159 = arith.addf %153, %158 : vector<16x16xf32>
    %160 = arith.addf %159, %155 : vector<16x16xf32>
    %c0_37 = arith.constant 0 : index
    %c0_38 = arith.constant 0 : index
    %c6_39 = arith.constant 6 : index
    %c0_40 = arith.constant 0 : index
    %161 = vector.load %arg7[%c0_37, %c0_38, %c6_39, %c0_40] : memref<1x1x8x16xf32, #tpu.memory_space<vmem>>, vector<1x1x2x16xf32>
    %162 = vector.shape_cast %161 : vector<1x1x2x16xf32> to vector<2x16xf32>
    %cst_41 = arith.constant 0.000000e+00 : f32
    %163 = vector.broadcast %cst_41 : f32 to vector<2x16xf32>
    %164 = arith.select %0, %162, %163 : vector<2x16xf32>
    %cst_42 = arith.constant 0.000000e+00 : f32
    %165 = vector.broadcast %cst_42 : f32 to vector<2x1xf32>
    %166 = vector.extract_strided_slice %164 {offsets = [0, 0], sizes = [2, 15], strides = [1, 1]} : vector<2x16xf32> to vector<2x15xf32>
    %167 = tpu.concatenate %165, %166 in 1 : vector<2x1xf32>, vector<2x15xf32> -> vector<2x16xf32>
    %168 = vector.extract_strided_slice %164 {offsets = [0, 1], sizes = [2, 15], strides = [1, 1]} : vector<2x16xf32> to vector<2x15xf32>
    %169 = tpu.concatenate %168, %165 in 1 : vector<2x15xf32>, vector<2x1xf32> -> vector<2x16xf32>
    %170 = arith.subf %169, %167 : vector<2x16xf32>
    %cst_43 = arith.constant 2.000000e+00 : f32
    %171 = vector.broadcast %cst_43 : f32 to vector<2x16xf32>
    %172 = arith.mulf %171, %164 : vector<2x16xf32>
    %173 = arith.addf %167, %172 : vector<2x16xf32>
    %174 = arith.addf %173, %169 : vector<2x16xf32>
    %175 = vector.extract_strided_slice %170 {offsets = [0, 0], sizes = [1, 16], strides = [1, 1]} : vector<2x16xf32> to vector<1x16xf32>
    %176 = vector.extract_strided_slice %170 {offsets = [1, 0], sizes = [1, 16], strides = [1, 1]} : vector<2x16xf32> to vector<1x16xf32>
    %cst_44 = arith.constant 2.000000e+00 : f32
    %177 = vector.broadcast %cst_44 : f32 to vector<1x16xf32>
    %178 = arith.mulf %177, %176 : vector<1x16xf32>
    %179 = arith.addf %175, %178 : vector<1x16xf32>
    %180 = vector.extract_strided_slice %156 {offsets = [0, 0], sizes = [1, 16], strides = [1, 1]} : vector<16x16xf32> to vector<1x16xf32>
    %181 = arith.addf %179, %180 : vector<1x16xf32>
    %182 = math.absf %181 : vector<1x16xf32>
    %183 = vector.extract_strided_slice %174 {offsets = [0, 0], sizes = [1, 16], strides = [1, 1]} : vector<2x16xf32> to vector<1x16xf32>
    %184 = vector.extract_strided_slice %160 {offsets = [0, 0], sizes = [1, 16], strides = [1, 1]} : vector<16x16xf32> to vector<1x16xf32>
    %185 = arith.subf %183, %184 : vector<1x16xf32>
    %186 = math.absf %185 : vector<1x16xf32>
    %187 = arith.addf %182, %186 : vector<1x16xf32>
    %188 = vector.extract_strided_slice %170 {offsets = [1, 0], sizes = [1, 16], strides = [1, 1]} : vector<2x16xf32> to vector<1x16xf32>
    %189 = vector.extract_strided_slice %156 {offsets = [0, 0], sizes = [1, 16], strides = [1, 1]} : vector<16x16xf32> to vector<1x16xf32>
    %cst_45 = arith.constant 2.000000e+00 : f32
    %190 = vector.broadcast %cst_45 : f32 to vector<1x16xf32>
    %191 = arith.mulf %190, %189 : vector<1x16xf32>
    %192 = arith.addf %188, %191 : vector<1x16xf32>
    %193 = vector.extract_strided_slice %156 {offsets = [1, 0], sizes = [1, 16], strides = [1, 1]} : vector<16x16xf32> to vector<1x16xf32>
    %194 = arith.addf %192, %193 : vector<1x16xf32>
    %195 = math.absf %194 : vector<1x16xf32>
    %196 = vector.extract_strided_slice %174 {offsets = [1, 0], sizes = [1, 16], strides = [1, 1]} : vector<2x16xf32> to vector<1x16xf32>
    %197 = vector.extract_strided_slice %160 {offsets = [1, 0], sizes = [1, 16], strides = [1, 1]} : vector<16x16xf32> to vector<1x16xf32>
    %198 = arith.subf %196, %197 : vector<1x16xf32>
    %199 = math.absf %198 : vector<1x16xf32>
    %200 = arith.addf %195, %199 : vector<1x16xf32>
    %201 = vector.extract_strided_slice %156 {offsets = [0, 0], sizes = [14, 16], strides = [1, 1]} : vector<16x16xf32> to vector<14x16xf32>
    %202 = vector.extract_strided_slice %156 {offsets = [1, 0], sizes = [14, 16], strides = [1, 1]} : vector<16x16xf32> to vector<14x16xf32>
    %cst_46 = arith.constant 2.000000e+00 : f32
    %203 = vector.broadcast %cst_46 : f32 to vector<14x16xf32>
    %204 = arith.mulf %203, %202 : vector<14x16xf32>
    %205 = arith.addf %201, %204 : vector<14x16xf32>
    %206 = vector.extract_strided_slice %156 {offsets = [2, 0], sizes = [14, 16], strides = [1, 1]} : vector<16x16xf32> to vector<14x16xf32>
    %207 = arith.addf %205, %206 : vector<14x16xf32>
    %208 = math.absf %207 : vector<14x16xf32>
    %209 = vector.extract_strided_slice %160 {offsets = [0, 0], sizes = [14, 16], strides = [1, 1]} : vector<16x16xf32> to vector<14x16xf32>
    %210 = vector.extract_strided_slice %160 {offsets = [2, 0], sizes = [14, 16], strides = [1, 1]} : vector<16x16xf32> to vector<14x16xf32>
    %211 = arith.subf %209, %210 : vector<14x16xf32>
    %212 = math.absf %211 : vector<14x16xf32>
    %213 = arith.addf %208, %212 : vector<14x16xf32>
    %214 = vector.extract_strided_slice %156 {offsets = [14, 0], sizes = [1, 16], strides = [1, 1]} : vector<16x16xf32> to vector<1x16xf32>
    %215 = vector.extract_strided_slice %156 {offsets = [15, 0], sizes = [1, 16], strides = [1, 1]} : vector<16x16xf32> to vector<1x16xf32>
    %cst_47 = arith.constant 2.000000e+00 : f32
    %216 = vector.broadcast %cst_47 : f32 to vector<1x16xf32>
    %217 = arith.mulf %216, %215 : vector<1x16xf32>
    %218 = arith.addf %214, %217 : vector<1x16xf32>
    %219 = math.absf %218 : vector<1x16xf32>
    %220 = vector.extract_strided_slice %160 {offsets = [14, 0], sizes = [1, 16], strides = [1, 1]} : vector<16x16xf32> to vector<1x16xf32>
    %221 = math.absf %220 : vector<1x16xf32>
    %222 = arith.addf %219, %221 : vector<1x16xf32>
    %223 = arith.maximumf %65, %139 : vector<14x16xf32>
    %224 = arith.subf %223, %213 : vector<14x16xf32>
    %225 = math.absf %224 : vector<14x16xf32>
    %226 = arith.maximumf %52, %126 : vector<1x16xf32>
    %227 = arith.subf %226, %200 : vector<1x16xf32>
    %228 = math.absf %227 : vector<1x16xf32>
    %229 = arith.maximumf %39, %113 : vector<1x16xf32>
    %230 = arith.subf %229, %187 : vector<1x16xf32>
    %231 = math.absf %230 : vector<1x16xf32>
    %232 = vector.shape_cast %225 : vector<14x16xf32> to vector<1x14x16xf32>
    %cst_48 = arith.constant dense<0.000000e+00> : vector<1xf32>
    %233 = vector.multi_reduction <add>, %232, %cst_48 [1, 2] : vector<1x14x16xf32> to vector<1xf32>
    %234 = vector.shape_cast %233 : vector<1xf32> to vector<1x1x1xf32>
    %235 = vector.extract %234[0, 0, 0] : f32 from vector<1x1x1xf32>
    %236 = vector.broadcast %235 : f32 to vector<1x1xf32>
    %237 = vector.shape_cast %228 : vector<1x16xf32> to vector<1x1x16xf32>
    %cst_49 = arith.constant dense<0.000000e+00> : vector<1xf32>
    %238 = vector.multi_reduction <add>, %237, %cst_49 [1, 2] : vector<1x1x16xf32> to vector<1xf32>
    %239 = vector.shape_cast %238 : vector<1xf32> to vector<1x1x1xf32>
    %240 = vector.extract %239[0, 0, 0] : f32 from vector<1x1x1xf32>
    %241 = vector.broadcast %240 : f32 to vector<1x1xf32>
    %242 = arith.addf %236, %241 : vector<1x1xf32>
    %243 = vector.shape_cast %231 : vector<1x16xf32> to vector<1x1x16xf32>
    %cst_50 = arith.constant dense<0.000000e+00> : vector<1xf32>
    %244 = vector.multi_reduction <add>, %243, %cst_50 [1, 2] : vector<1x1x16xf32> to vector<1xf32>
    %245 = vector.shape_cast %244 : vector<1xf32> to vector<1x1x1xf32>
    %246 = vector.extract %245[0, 0, 0] : f32 from vector<1x1x1xf32>
    %247 = vector.broadcast %246 : f32 to vector<1x1xf32>
    %cst_51 = arith.constant 0.000000e+00 : f32
    %248 = vector.broadcast %cst_51 : f32 to vector<1x1xf32>
    %249 = arith.select %0, %247, %248 : vector<1x1xf32>
    %250 = arith.addf %242, %249 : vector<1x1xf32>
    %251 = arith.maximumf %74, %148 : vector<1x16xf32>
    %252 = arith.subf %251, %222 : vector<1x16xf32>
    %253 = math.absf %252 : vector<1x16xf32>
    %c0_i32_52 = arith.constant 0 : i32
    %254 = arith.cmpi eq, %arg1, %c0_i32_52 : i32
    %255 = vector.shape_cast %253 : vector<1x16xf32> to vector<1x1x16xf32>
    %cst_53 = arith.constant dense<0.000000e+00> : vector<1xf32>
    %256 = vector.multi_reduction <add>, %255, %cst_53 [1, 2] : vector<1x1x16xf32> to vector<1xf32>
    %257 = vector.shape_cast %256 : vector<1xf32> to vector<1x1x1xf32>
    %258 = vector.extract %257[0, 0, 0] : f32 from vector<1x1x1xf32>
    %259 = vector.broadcast %258 : f32 to vector<1x1xf32>
    %cst_54 = arith.constant 0.000000e+00 : f32
    %260 = vector.broadcast %cst_54 : f32 to vector<1x1xf32>
    %261 = arith.select %254, %259, %260 : vector<1x1xf32>
    %262 = arith.addf %250, %261 : vector<1x1xf32>
    %c0_55 = arith.constant 0 : index
    %c0_56 = arith.constant 0 : index
    %c0_57 = arith.constant 0 : index
    %c0_58 = arith.constant 0 : index
    %263 = vector.load %arg8[%c0_55, %c0_56, %c0_57, %c0_58] : memref<1x1x1x1xf32, #tpu.memory_space<vmem>>, vector<1x1x1x1xf32>
    %264 = vector.shape_cast %263 : vector<1x1x1x1xf32> to vector<1x1xf32>
    %265 = vector.shape_cast %262 : vector<1x1xf32> to vector<1x1x1x1xf32>
    tpu.vector_store %arg8[%c0_55, %c0_56, %c0_57, %c0_58], %265 {strides = array<i32>} : memref<1x1x1x1xf32, #tpu.memory_space<vmem>>, vector<1x1x1x1xf32>,
    return
  }
  func.func @transform_0(%arg0: i32, %arg1: i32) -> (i32, i32, i32, i32) {
    %c0_i32 = arith.constant 0 : i32
    %c0_i32_0 = arith.constant 0 : i32
    %c0_i32_1 = arith.constant 0 : i32
    return %arg0, %c0_i32, %arg1, %c0_i32_0 : i32, i32, i32, i32
  }
  func.func @transform_1(%arg0: i32, %arg1: i32) -> (i32, i32, i32, i32) {
    %c0_i32 = arith.constant 0 : i32
    %c0_i32_0 = arith.constant 0 : i32
    %c0_i32_1 = arith.constant 0 : i32
    return %arg0, %c0_i32, %arg1, %c0_i32_0 : i32, i32, i32, i32
  }
  func.func @transform_2(%arg0: i32, %arg1: i32) -> (i32, i32, i32, i32) {
    %c0_i32 = arith.constant 0 : i32
    %c0_i32_0 = arith.constant 0 : i32
    %c0_i32_1 = arith.constant 0 : i32
    return %arg0, %c0_i32, %arg1, %c0_i32_0 : i32, i32, i32, i32
  }
  func.func @transform_3(%arg0: i32, %arg1: i32) -> (i32, i32, i32, i32) {
    %c2_i32 = arith.constant 2 : i32
    %0 = arith.muli %arg1, %c2_i32 : i32
    %c1_i32 = arith.constant 1 : i32
    %1 = arith.subi %0, %c1_i32 : i32
    %c0_i32 = arith.constant 0 : i32
    %2 = arith.maxsi %1, %c0_i32 : i32
    %c0_i32_0 = arith.constant 0 : i32
    %c0_i32_1 = arith.constant 0 : i32
    %c0_i32_2 = arith.constant 0 : i32
    return %arg0, %c0_i32_0, %2, %c0_i32_1 : i32, i32, i32, i32
  }
  func.func @transform_4(%arg0: i32, %arg1: i32) -> (i32, i32, i32, i32) {
    %c2_i32 = arith.constant 2 : i32
    %0 = arith.muli %arg1, %c2_i32 : i32
    %c1_i32 = arith.constant 1 : i32
    %1 = arith.subi %0, %c1_i32 : i32
    %c0_i32 = arith.constant 0 : i32
    %2 = arith.maxsi %1, %c0_i32 : i32
    %c0_i32_0 = arith.constant 0 : i32
    %c0_i32_1 = arith.constant 0 : i32
    %c0_i32_2 = arith.constant 0 : i32
    return %arg0, %c0_i32_0, %2, %c0_i32_1 : i32, i32, i32, i32
  }
  func.func @transform_5(%arg0: i32, %arg1: i32) -> (i32, i32, i32, i32) {
    %c2_i32 = arith.constant 2 : i32
    %0 = arith.muli %arg1, %c2_i32 : i32
    %c1_i32 = arith.constant 1 : i32
    %1 = arith.subi %0, %c1_i32 : i32
    %c0_i32 = arith.constant 0 : i32
    %2 = arith.maxsi %1, %c0_i32 : i32
    %c0_i32_0 = arith.constant 0 : i32
    %c0_i32_1 = arith.constant 0 : i32
    %c0_i32_2 = arith.constant 0 : i32
    return %arg0, %c0_i32_0, %2, %c0_i32_1 : i32, i32, i32, i32
  }
  func.func @transform_6(%arg0: i32, %arg1: i32) -> (i32, i32, i32, i32) {
    %c0_i32 = arith.constant 0 : i32
    %c0_i32_0 = arith.constant 0 : i32
    %c0_i32_1 = arith.constant 0 : i32
    return %arg0, %arg1, %c0_i32, %c0_i32_0 : i32, i32, i32, i32
  }
}

</mosaic_0001>

<llo_original>
// kernel: tpu_custom_call.1
$region0: #{tpu_custom_call.1}
  #allocation0 [shape = 'u32[]', space=smem, size = 0x4, offset = 0x4, fixed_abs, tag = 'smem constant byte address 0x4 - core index']
  #allocation1 [shape = 'u32[144,128]{1,0:T(1,128)}', space=vmem, size = 0x12000, scoped, tag = 'internal scratch']
  %s0 = inlined_call_operand.hbm [shape: f32[2,1,16,16], index: 0, kind: input, shape index: {}]
  %s1 = inlined_call_operand.hbm [shape: f32[2,1,16,16], index: 1, kind: input, shape index: {}]
  %s2 = inlined_call_operand.hbm [shape: f32[2,1,16,16], index: 2, kind: input, shape index: {}]
  %s3 = inlined_call_operand.hbm [shape: f32[2,1,16,16], index: 3, kind: input, shape index: {}]
  %s4 = inlined_call_operand.hbm [shape: f32[2,1,16,16], index: 4, kind: input, shape index: {}]
  %s5 = inlined_call_operand.hbm [shape: f32[2,1,16,16], index: 5, kind: input, shape index: {}]
  %s6 = inlined_call_operand.vmem [shape: f32[2,1,1,1], index: 6, kind: output, shape index: {}]
  %s7 = sld [smem:[#allocation0]]
  $region81: #{tpu_custom_call.1} parent=0
    _
  %s9 = ssub.s32 1, %s7
  %s10 = scalar_select 0, %s9, %s7
  $region1: #{tpu_custom_call.1} parent=0
    #allocation2 [shape = 'u8[16384]{0}', space=vmem, size = 0x4000, scoped, tag = 'input window, operand 0']
    #allocation3 [shape = 's32[2]{0}', space=sflag, size = 0x8, scoped, tag = 'scoped memory for tpu_custom_call.1']
    #allocation4 [shape = 'u8[16384]{0}', space=vmem, size = 0x4000, scoped, tag = 'input window, operand 1']
    #allocation5 [shape = 's32[2]{0}', space=sflag, size = 0x8, scoped, tag = 'scoped memory for tpu_custom_call.1']
    #allocation6 [shape = 'u8[16384]{0}', space=vmem, size = 0x4000, scoped, tag = 'input window, operand 2']
    #allocation7 [shape = 'u8[8192]{0}', space=vmem, size = 0x2000, scoped, tag = 'input window, operand 3']
    #allocation8 [shape = 's32[2]{0}', space=sflag, size = 0x8, scoped, tag = 'scoped memory for tpu_custom_call.1']
    #allocation9 [shape = 'u8[8192]{0}', space=vmem, size = 0x2000, scoped, tag = 'input window, operand 4']
    #allocation10 [shape = 'u8[8192]{0}', space=vmem, size = 0x2000, scoped, tag = 'input window, operand 5']
    #allocation11 [shape = 's32[2]{0}', space=sflag, size = 0x8, scoped, tag = 'scoped memory for tpu_custom_call.1']
    %11 = vsyncpa [#allocation3], 0
    %s12 = scalar_lea.sflag [#allocation3], 1
    %13 = vsyncpa %s12, 0
    %14 = vsyncpa [#allocation5], 0
    %s15 = scalar_lea.sflag [#allocation5], 1
    %16 = vsyncpa %s15, 0
    %17 = vsyncpa [#allocation8], 0
    %s18 = scalar_lea.sflag [#allocation8], 1
    %19 = vsyncpa %s18, 0
    %20 = vsyncpa [#allocation11], 0
    %s21 = scalar_lea.sflag [#allocation11], 1
    %22 = vsyncpa %s21, 0
    loop: start=0, step=1, limit=4
    $region2: #{tpu_custom_call.1} parent=1 // loop_pre_header
      _
    $region3: #{tpu_custom_call.1} parent=1 // loop_header
      %s24 = sphi 0, %s28
      %p25 = scmp.ge.s32.totalorder %s24, 4
      %s31 = sphi 0, %s43
      %s32 = sphi 0, %s39
      %s33 = sphi 0, %s31
      %s34 = sphi 0, %s32
      %s35 = sphi 0, %s33
      %s36 = sphi 0, %s34
      %s48 = sphi 0, %s50
      %s51 = sphi 0, %s48
      %s52 = sphi 0, %s51
      %s68 = sphi 0, %s52
      %s76 = sphi 0, %s78
      %s79 = sphi 0, %s76
      %s80 = sphi 0, %s79
      %s96 = sphi 0, %s80
      %s104 = sphi 0, %s106
      %s107 = sphi 0, %s104
      %s108 = sphi 0, %s107
      %s124 = sphi 0, %s108
      %s140 = sphi 0, %s142
      %s143 = sphi 0, %s140
      %s144 = sphi 0, %s143
      %s160 = sphi 0, %s144
      %s176 = sphi 0, %s178
      %s179 = sphi 0, %s176
      %s180 = sphi 0, %s179
      %s196 = sphi 0, %s180
      %s212 = sphi 0, %s214
      %s215 = sphi 0, %s212
      %s216 = sphi 0, %s215
      %s232 = sphi 0, %s216
      %s240 = sphi 0, %s242
      %s243 = sphi 0, %s240
      %s244 = sphi 0, %s243
      %s260 = sphi 0, %s244
    $region4: #{tpu_custom_call.1} parent=1 // loop_header_branch
      %27 = sbr.rel (%p25) target = $region8
    $region5: #{tpu_custom_call.1} parent=1 // loop_body
      %s29 = ssub.s32 %s24, 1
      %s30 = ssub.s32 %s24, 2
      %s37 = sadd.s32 1, %s32
      %p38 = scmp.ge.s32.totalorder %s37, 1
      %s39 = scalar_select %p38, 0, %s37
      %s40 = sadd.s32 1, %s31
      %s41 = scalar_select %p38, %s40, %s31
      %p42 = scmp.ge.s32.totalorder %s41, 2
      %s43 = scalar_select %p42, 0, %s41
      %s44 = ssub.s32 %s31, %s43
      %s45 = ssub.s32 %s32, %s39
      %s46 = sor.u32 %s44, %s45
      %p47 = scmp.eq.s32.totalorder %s46, 0
      %s49 = sadd.s32 %s48, 1
      %s50 = scalar_select %p47, %s48, %s49
      %p53 = pneg %p47
      %p54 = scmp.eq.s32.totalorder %s24, 1
      %p55 = por %p53, %p54
      %p56 = scmp.ne.s32.totalorder %s48, %s51
      %p57 = scmp.eq.s32.totalorder %s24, 0
      %p58 = por %p56, %p57
      %p59 = scmp.ne.s32.totalorder %s48, %s51
      %p60 = scmp.eq.s32.totalorder %s29, 1
      %p61 = por %p59, %p60
      %p62 = scmp.ne.s32.totalorder %s51, %s52
      %p63 = scmp.eq.s32.totalorder %s29, 0
      %p64 = por %p62, %p63
      %p65 = scmp.ne.s32.totalorder %s51, %s52
      %p66 = scmp.eq.s32.totalorder %s30, 1
      %p67 = por %p65, %p66
      %p69 = scmp.ne.s32.totalorder %s52, %s68
      %p70 = scmp.eq.s32.totalorder %s30, 0
      %p71 = por %p69, %p70
      %s72 = ssub.s32 %s31, %s43
      %s73 = ssub.s32 %s32, %s39
      %s74 = sor.u32 %s72, %s73
      %p75 = scmp.eq.s32.totalorder %s74, 0
      %s77 = sadd.s32 %s76, 1
      %s78 = scalar_select %p75, %s76, %s77
      %p81 = pneg %p75
      %p82 = scmp.eq.s32.totalorder %s24, 1
      %p83 = por %p81, %p82
      %p84 = scmp.ne.s32.totalorder %s76, %s79
      %p85 = scmp.eq.s32.totalorder %s24, 0
      %p86 = por %p84, %p85
      %p87 = scmp.ne.s32.totalorder %s76, %s79
      %p88 = scmp.eq.s32.totalorder %s29, 1
      %p89 = por %p87, %p88
      %p90 = scmp.ne.s32.totalorder %s79, %s80
      %p91 = scmp.eq.s32.totalorder %s29, 0
      %p92 = por %p90, %p91
      %p93 = scmp.ne.s32.totalorder %s79, %s80
      %p94 = scmp.eq.s32.totalorder %s30, 1
      %p95 = por %p93, %p94
      %p97 = scmp.ne.s32.totalorder %s80, %s96
      %p98 = scmp.eq.s32.totalorder %s30, 0
      %p99 = por %p97, %p98
      %s100 = ssub.s32 %s31, %s43
      %s101 = ssub.s32 %s32, %s39
      %s102 = sor.u32 %s100, %s101
      %p103 = scmp.eq.s32.totalorder %s102, 0
      %s105 = sadd.s32 %s104, 1
      %s106 = scalar_select %p103, %s104, %s105
      %p109 = pneg %p103
      %p110 = scmp.eq.s32.totalorder %s24, 1
      %p111 = por %p109, %p110
      %p112 = scmp.ne.s32.totalorder %s104, %s107
      %p113 = scmp.eq.s32.totalorder %s24, 0
      %p114 = por %p112, %p113
      %p115 = scmp.ne.s32.totalorder %s104, %s107
      %p116 = scmp.eq.s32.totalorder %s29, 1
      %p117 = por %p115, %p116
      %p118 = scmp.ne.s32.totalorder %s107, %s108
      %p119 = scmp.eq.s32.totalorder %s29, 0
      %p120 = por %p118, %p119
      %p121 = scmp.ne.s32.totalorder %s107, %s108
      %p122 = scmp.eq.s32.totalorder %s30, 1
      %p123 = por %p121, %p122
      %p125 = scmp.ne.s32.totalorder %s108, %s124
      %p126 = scmp.eq.s32.totalorder %s30, 0
      %p127 = por %p125, %p126
      %s128 = smul.u32 %s32, 2
      %s129 = ssub.s32 %s128, 1
      %p130 = scmp.gt.s32.totalorder %s129, 0
      %s131 = scalar_select %p130, %s129, 0
      %s132 = smul.u32 %s39, 2
      %s133 = ssub.s32 %s132, 1
      %p134 = scmp.gt.s32.totalorder %s133, 0
      %s135 = scalar_select %p134, %s133, 0
      %s136 = ssub.s32 %s31, %s43
      %s137 = ssub.s32 %s131, %s135
      %s138 = sor.u32 %s136, %s137
      %p139 = scmp.eq.s32.totalorder %s138, 0
      %s141 = sadd.s32 %s140, 1
      %s142 = scalar_select %p139, %s140, %s141
      %p145 = pneg %p139
      %p146 = scmp.eq.s32.totalorder %s24, 1
      %p147 = por %p145, %p146
      %p148 = scmp.ne.s32.totalorder %s140, %s143
      %p149 = scmp.eq.s32.totalorder %s24, 0
      %p150 = por %p148, %p149
      %p151 = scmp.ne.s32.totalorder %s140, %s143
      %p152 = scmp.eq.s32.totalorder %s29, 1
      %p153 = por %p151, %p152
      %p154 = scmp.ne.s32.totalorder %s143, %s144
      %p155 = scmp.eq.s32.totalorder %s29, 0
      %p156 = por %p154, %p155
      %p157 = scmp.ne.s32.totalorder %s143, %s144
      %p158 = scmp.eq.s32.totalorder %s30, 1
      %p159 = por %p157, %p158
      %p161 = scmp.ne.s32.totalorder %s144, %s160
      %p162 = scmp.eq.s32.totalorder %s30, 0
      %p163 = por %p161, %p162
      %s164 = smul.u32 %s32, 2
      %s165 = ssub.s32 %s164, 1
      %p166 = scmp.gt.s32.totalorder %s165, 0
      %s167 = scalar_select %p166, %s165, 0
      %s168 = smul.u32 %s39, 2
      %s169 = ssub.s32 %s168, 1
      %p170 = scmp.gt.s32.totalorder %s169, 0
      %s171 = scalar_select %p170, %s169, 0
      %s172 = ssub.s32 %s31, %s43
      %s173 = ssub.s32 %s167, %s171
      %s174 = sor.u32 %s172, %s173
      %p175 = scmp.eq.s32.totalorder %s174, 0
      %s177 = sadd.s32 %s176, 1
      %s178 = scalar_select %p175, %s176, %s177
      %p181 = pneg %p175
      %p182 = scmp.eq.s32.totalorder %s24, 1
      %p183 = por %p181, %p182
      %p184 = scmp.ne.s32.totalorder %s176, %s179
      %p185 = scmp.eq.s32.totalorder %s24, 0
      %p186 = por %p184, %p185
      %p187 = scmp.ne.s32.totalorder %s176, %s179
      %p188 = scmp.eq.s32.totalorder %s29, 1
      %p189 = por %p187, %p188
      %p190 = scmp.ne.s32.totalorder %s179, %s180
      %p191 = scmp.eq.s32.totalorder %s29, 0
      %p192 = por %p190, %p191
      %p193 = scmp.ne.s32.totalorder %s179, %s180
      %p194 = scmp.eq.s32.totalorder %s30, 1
      %p195 = por %p193, %p194
      %p197 = scmp.ne.s32.totalorder %s180, %s196
      %p198 = scmp.eq.s32.totalorder %s30, 0
      %p199 = por %p197, %p198
      %s200 = smul.u32 %s32, 2
      %s201 = ssub.s32 %s200, 1
      %p202 = scmp.gt.s32.totalorder %s201, 0
      %s203 = scalar_select %p202, %s201, 0
      %s204 = smul.u32 %s39, 2
      %s205 = ssub.s32 %s204, 1
      %p206 = scmp.gt.s32.totalorder %s205, 0
      %s207 = scalar_select %p206, %s205, 0
      %s208 = ssub.s32 %s31, %s43
      %s209 = ssub.s32 %s203, %s207
      %s210 = sor.u32 %s208, %s209
      %p211 = scmp.eq.s32.totalorder %s210, 0
      %s213 = sadd.s32 %s212, 1
      %s214 = scalar_select %p211, %s212, %s213
      %p217 = pneg %p211
      %p218 = scmp.eq.s32.totalorder %s24, 1
      %p219 = por %p217, %p218
      %p220 = scmp.ne.s32.totalorder %s212, %s215
      %p221 = scmp.eq.s32.totalorder %s24, 0
      %p222 = por %p220, %p221
      %p223 = scmp.ne.s32.totalorder %s212, %s215
      %p224 = scmp.eq.s32.totalorder %s29, 1
      %p225 = por %p223, %p224
      %p226 = scmp.ne.s32.totalorder %s215, %s216
      %p227 = scmp.eq.s32.totalorder %s29, 0
      %p228 = por %p226, %p227
      %p229 = scmp.ne.s32.totalorder %s215, %s216
      %p230 = scmp.eq.s32.totalorder %s30, 1
      %p231 = por %p229, %p230
      %p233 = scmp.ne.s32.totalorder %s216, %s232
      %p234 = scmp.eq.s32.totalorder %s30, 0
      %p235 = por %p233, %p234
      %s236 = ssub.s32 %s31, %s43
      %s237 = ssub.s32 %s32, %s39
      %s238 = sor.u32 %s236, %s237
      %p239 = scmp.eq.s32.totalorder %s238, 0
      %s241 = sadd.s32 %s240, 1
      %s242 = scalar_select %p239, %s240, %s241
      %p245 = pneg %p239
      %p246 = scmp.eq.s32.totalorder %s24, 1
      %p247 = por %p245, %p246
      %p248 = scmp.ne.s32.totalorder %s240, %s243
      %p249 = scmp.eq.s32.totalorder %s24, 0
      %p250 = por %p248, %p249
      %p251 = scmp.ne.s32.totalorder %s240, %s243
      %p252 = scmp.eq.s32.totalorder %s29, 1
      %p253 = por %p251, %p252
      %p254 = scmp.ne.s32.totalorder %s243, %s244
      %p255 = scmp.eq.s32.totalorder %s29, 0
      %p256 = por %p254, %p255
      %p257 = scmp.ne.s32.totalorder %s243, %s244
      %p258 = scmp.eq.s32.totalorder %s30, 1
      %p259 = por %p257, %p258
      %p261 = scmp.ne.s32.totalorder %s244, %s260
      %p262 = scmp.eq.s32.totalorder %s30, 0
      %p263 = por %p261, %p262
      %p264 = scmp.le.s32.totalorder 1, %s24
      %p265 = scmp.lt.s32.totalorder %s24, 3
      %p266 = pnand %p264, %p265
      %p267 = pneg %p266
      // Predicated region
      $region9: #{tpu_custom_call.1} parent=5 // pred_check
        _
      $region10: #{tpu_custom_call.1} parent=5 // pred_check_branch
        %269 = sbr.rel (%p266) target = $region12
      $region11: #{tpu_custom_call.1} parent=5 // pred_region
        %s270 = ssub.s32 %s24, 1
      $region12: #{tpu_custom_call.1} parent=5 // pred_fallthru
        _
      %p271 = scmp.lt.s32.totalorder %s24, 2
      // Predicated region
      $region13: #{tpu_custom_call.1} parent=5 // pred_check
        %p272 = pneg %p271
      $region14: #{tpu_custom_call.1} parent=5 // pred_check_branch
        %274 = sbr.rel (%p272) target = $region16
      $region15: #{tpu_custom_call.1} parent=5 // pred_region
        // Predicated region
        $region17: #{tpu_custom_call.1} parent=15 // pred_check
          %p275 = pneg %p58
        $region18: #{tpu_custom_call.1} parent=15 // pred_check_branch
          %277 = sbr.rel (%p275) target = $region20
        $region19: #{tpu_custom_call.1} parent=15 // pred_region
          %s278 = sand.u32 %s48, 1
          %s279 = scalar_lea.sflag [#allocation3], %s278
          %s280 = sand.u32 %s48, 1
          %s281 = smul.addr %s280, 16
          %s282 = scalar_lea.vmem [#allocation2], %s281
          %s283 = smul.u32 2, %s32
          %s285 = ssub.s32 256, 256
          %286 = vsyncadd %s279, %s285
          %s287 = smul.addr %s31, 2
          %s288 = sadd.s32 %s283, %s287
          %s289 = smul.addr %s288, 128
          %s290 = scalar_lea.hbm %s0, %s289
          %s291 = sshll.u32 %s282, 4
          %s292 = int_to_ptr.vmem [resolvable:$true] %s291
          %297 = dma.hbm_to_vmem [thread:$0]  %s290, 256, %s292, %s279, 128, 128, 8
        $region20: #{tpu_custom_call.1} parent=15 // pred_fallthru
          _
        // Predicated region
        $region21: #{tpu_custom_call.1} parent=15 // pred_check
          %p298 = pneg %p86
        $region22: #{tpu_custom_call.1} parent=15 // pred_check_branch
          %300 = sbr.rel (%p298) target = $region24
        $region23: #{tpu_custom_call.1} parent=15 // pred_region
          %s301 = sand.u32 %s24, 1
          %s302 = scalar_lea.sflag [#allocation5], %s301
          %s303 = sand.u32 %s76, 1
          %s304 = smul.addr %s303, 16
          %s305 = scalar_lea.vmem [#allocation4], %s304
          %s306 = smul.u32 2, %s32
          %s308 = ssub.s32 256, 256
          %309 = vsyncadd %s302, %s308
          %s310 = smul.addr %s31, 2
          %s311 = sadd.s32 %s306, %s310
          %s312 = smul.addr %s311, 128
          %s313 = scalar_lea.hbm %s1, %s312
          %s314 = sshll.u32 %s305, 4
          %s315 = int_to_ptr.vmem [resolvable:$true] %s314
          %320 = dma.hbm_to_vmem [thread:$0]  %s313, 256, %s315, %s302, 128, 128, 8
        $region24: #{tpu_custom_call.1} parent=15 // pred_fallthru
          _
        // Predicated region
        $region25: #{tpu_custom_call.1} parent=15 // pred_check
          %p321 = pneg %p114
        $region26: #{tpu_custom_call.1} parent=15 // pred_check_branch
          %323 = sbr.rel (%p321) target = $region28
        $region27: #{tpu_custom_call.1} parent=15 // pred_region
          %s324 = sand.u32 %s24, 1
          %s325 = scalar_lea.sflag [#allocation5], %s324
          %s326 = sand.u32 %s104, 1
          %s327 = smul.addr %s326, 16
          %s328 = scalar_lea.vmem [#allocation6], %s327
          %s329 = smul.u32 2, %s32
          %s331 = ssub.s32 256, 256
          %332 = vsyncadd %s325, %s331
          %s333 = smul.addr %s31, 2
          %s334 = sadd.s32 %s329, %s333
          %s335 = smul.addr %s334, 128
          %s336 = scalar_lea.hbm %s2, %s335
          %s337 = sshll.u32 %s328, 4
          %s338 = int_to_ptr.vmem [resolvable:$true] %s337
          %343 = dma.hbm_to_vmem [thread:$0]  %s336, 256, %s338, %s325, 128, 128, 8
        $region28: #{tpu_custom_call.1} parent=15 // pred_fallthru
          _
        // Predicated region
        $region29: #{tpu_custom_call.1} parent=15 // pred_check
          %p344 = pneg %p150
        $region30: #{tpu_custom_call.1} parent=15 // pred_check_branch
          %346 = sbr.rel (%p344) target = $region32
        $region31: #{tpu_custom_call.1} parent=15 // pred_region
          %s347 = sand.u32 %s24, 1
          %s348 = scalar_lea.sflag [#allocation8], %s347
          %s349 = sand.u32 %s140, 1
          %s350 = smul.addr %s349, 8
          %s351 = scalar_lea.vmem [#allocation7], %s350
          %s352 = smul.u32 %s32, 2
          %s353 = ssub.s32 %s352, 1
          %p354 = scmp.gt.s32.totalorder %s353, 0
          %s355 = scalar_select %p354, %s353, 0
          %s357 = ssub.s32 128, 128
          %358 = vsyncadd %s348, %s357
          %s359 = smul.addr %s31, 2
          %s360 = sadd.s32 %s355, %s359
          %s361 = smul.addr %s360, 128
          %s362 = scalar_lea.hbm %s3, %s361
          %s364 = sshll.u32 %s351, 4
          %s365 = int_to_ptr.vmem [resolvable:$true] %s364
          %367 = dma.hbm_to_vmem [thread:$0]  %s362, 128, %s365, %s348
        $region32: #{tpu_custom_call.1} parent=15 // pred_fallthru
          _
        // Predicated region
        $region33: #{tpu_custom_call.1} parent=15 // pred_check
          %p368 = pneg %p186
        $region34: #{tpu_custom_call.1} parent=15 // pred_check_branch
          %370 = sbr.rel (%p368) target = $region36
        $region35: #{tpu_custom_call.1} parent=15 // pred_region
          %s371 = sand.u32 %s24, 1
          %s372 = scalar_lea.sflag [#allocation8], %s371
          %s373 = sand.u32 %s176, 1
          %s374 = smul.addr %s373, 8
          %s375 = scalar_lea.vmem [#allocation9], %s374
          %s376 = smul.u32 %s32, 2
          %s377 = ssub.s32 %s376, 1
          %p378 = scmp.gt.s32.totalorder %s377, 0
          %s379 = scalar_select %p378, %s377, 0
          %s381 = ssub.s32 128, 128
          %382 = vsyncadd %s372, %s381
          %s383 = smul.addr %s31, 2
          %s384 = sadd.s32 %s379, %s383
          %s385 = smul.addr %s384, 128
          %s386 = scalar_lea.hbm %s4, %s385
          %s388 = sshll.u32 %s375, 4
          %s389 = int_to_ptr.vmem [resolvable:$true] %s388
          %391 = dma.hbm_to_vmem [thread:$0]  %s386, 128, %s389, %s372
        $region36: #{tpu_custom_call.1} parent=15 // pred_fallthru
          _
        // Predicated region
        $region37: #{tpu_custom_call.1} parent=15 // pred_check
          %p392 = pneg %p222
        $region38: #{tpu_custom_call.1} parent=15 // pred_check_branch
          %394 = sbr.rel (%p392) target = $region40
        $region39: #{tpu_custom_call.1} parent=15 // pred_region
          %s395 = sand.u32 %s212, 1
          %s396 = scalar_lea.sflag [#allocation11], %s395
          %s397 = sand.u32 %s212, 1
          %s398 = smul.addr %s397, 8
          %s399 = scalar_lea.vmem [#allocation10], %s398
          %s400 = smul.u32 %s32, 2
          %s401 = ssub.s32 %s400, 1
          %p402 = scmp.gt.s32.totalorder %s401, 0
          %s403 = scalar_select %p402, %s401, 0
          %s405 = ssub.s32 128, 128
          %406 = vsyncadd %s396, %s405
          %s407 = smul.addr %s31, 2
          %s408 = sadd.s32 %s403, %s407
          %s409 = smul.addr %s408, 128
          %s410 = scalar_lea.hbm %s5, %s409
          %s412 = sshll.u32 %s399, 4
          %s413 = int_to_ptr.vmem [resolvable:$true] %s412
          %415 = dma.hbm_to_vmem [thread:$0]  %s410, 128, %s413, %s396
        $region40: #{tpu_custom_call.1} parent=15 // pred_fallthru
          _
      $region16: #{tpu_custom_call.1} parent=5 // pred_fallthru
        _
      %p416 = scmp.le.s32.totalorder 1, %s24
      %p417 = scmp.lt.s32.totalorder %s24, 3
      %p418 = pnand %p416, %p417
      %p419 = pneg %p418
      // Predicated region
      $region41: #{tpu_custom_call.1} parent=5 // pred_check
        _
      $region42: #{tpu_custom_call.1} parent=5 // pred_check_branch
        %421 = sbr.rel (%p418) target = $region44
      $region43: #{tpu_custom_call.1} parent=5 // pred_region
        %s422 = ssub.s32 %s24, 1
        %s423 = sand.u32 %s51, 1
        %s424 = scalar_lea.sflag [#allocation3], %s423
        %s425 = sand.u32 %s51, 1
        %s426 = smul.addr %s425, 16
        %s427 = scalar_lea.vmem [#allocation2], %s426
        // Predicated region
        $region45: #{tpu_custom_call.1} parent=43 // pred_check
          %p428 = pneg %p64
        $region46: #{tpu_custom_call.1} parent=43 // pred_check_branch
          %430 = sbr.rel (%p428) target = $region48
        $region47: #{tpu_custom_call.1} parent=43 // pred_region
          %431 = dma.done %s424, 256
        $region48: #{tpu_custom_call.1} parent=43 // pred_fallthru
          _
        %s432 = sand.u32 %s29, 1
        %s433 = scalar_lea.sflag [#allocation5], %s432
        %s434 = sand.u32 %s79, 1
        %s435 = smul.addr %s434, 16
        %s436 = scalar_lea.vmem [#allocation4], %s435
        // Predicated region
        $region49: #{tpu_custom_call.1} parent=43 // pred_check
          %p437 = pneg %p92
        $region50: #{tpu_custom_call.1} parent=43 // pred_check_branch
          %439 = sbr.rel (%p437) target = $region52
        $region51: #{tpu_custom_call.1} parent=43 // pred_region
          %440 = dma.done %s433, 256
        $region52: #{tpu_custom_call.1} parent=43 // pred_fallthru
          _
        %s441 = sand.u32 %s29, 1
        %s442 = scalar_lea.sflag [#allocation5], %s441
        %s443 = sand.u32 %s107, 1
        %s444 = smul.addr %s443, 16
        %s445 = scalar_lea.vmem [#allocation6], %s444
        // Predicated region
        $region53: #{tpu_custom_call.1} parent=43 // pred_check
          %p446 = pneg %p120
        $region54: #{tpu_custom_call.1} parent=43 // pred_check_branch
          %448 = sbr.rel (%p446) target = $region56
        $region55: #{tpu_custom_call.1} parent=43 // pred_region
          %449 = dma.done %s442, 256
        $region56: #{tpu_custom_call.1} parent=43 // pred_fallthru
          _
        %s450 = sand.u32 %s29, 1
        %s451 = scalar_lea.sflag [#allocation8], %s450
        %s452 = sand.u32 %s143, 1
        %s453 = smul.addr %s452, 8
        %s454 = scalar_lea.vmem [#allocation7], %s453
        // Predicated region
        $region57: #{tpu_custom_call.1} parent=43 // pred_check
          %p455 = pneg %p156
        $region58: #{tpu_custom_call.1} parent=43 // pred_check_branch
          %457 = sbr.rel (%p455) target = $region60
        $region59: #{tpu_custom_call.1} parent=43 // pred_region
          %458 = dma.done %s451, 128
        $region60: #{tpu_custom_call.1} parent=43 // pred_fallthru
          _
        %s459 = sand.u32 %s29, 1
        %s460 = scalar_lea.sflag [#allocation8], %s459
        %s461 = sand.u32 %s179, 1
        %s462 = smul.addr %s461, 8
        %s463 = scalar_lea.vmem [#allocation9], %s462
        // Predicated region
        $region61: #{tpu_custom_call.1} parent=43 // pred_check
          %p464 = pneg %p192
        $region62: #{tpu_custom_call.1} parent=43 // pred_check_branch
          %466 = sbr.rel (%p464) target = $region64
        $region63: #{tpu_custom_call.1} parent=43 // pred_region
          %467 = dma.done %s460, 128
        $region64: #{tpu_custom_call.1} parent=43 // pred_fallthru
          _
        %s468 = sand.u32 %s215, 1
        %s469 = scalar_lea.sflag [#allocation11], %s468
        %s470 = sand.u32 %s215, 1
        %s471 = smul.addr %s470, 8
        %s472 = scalar_lea.vmem [#allocation10], %s471
        // Predicated region
        $region65: #{tpu_custom_call.1} parent=43 // pred_check
          %p473 = pneg %p228
        $region66: #{tpu_custom_call.1} parent=43 // pred_check_branch
          %475 = sbr.rel (%p473) target = $region68
        $region67: #{tpu_custom_call.1} parent=43 // pred_region
          %476 = dma.done %s469, 128
        $region68: #{tpu_custom_call.1} parent=43 // pred_fallthru
          _
        %s477 = sand.u32 %s51, 1
        %s478 = scalar_lea.sflag [#allocation3], %s477
        %s479 = sand.u32 %s51, 1
        %s480 = smul.addr %s479, 16
        %s481 = scalar_lea.vmem [#allocation2], %s480
        %p482 = pneg %p64
        %p483 = pneg %p61
        %s484 = sand.u32 %s29, 1
        %s485 = scalar_lea.sflag [#allocation5], %s484
        %s486 = sand.u32 %s79, 1
        %s487 = smul.addr %s486, 16
        %s488 = scalar_lea.vmem [#allocation4], %s487
        %p489 = pneg %p92
        %p490 = pneg %p89
        %s491 = sand.u32 %s29, 1
        %s492 = scalar_lea.sflag [#allocation5], %s491
        %s493 = sand.u32 %s107, 1
        %s494 = smul.addr %s493, 16
        %s495 = scalar_lea.vmem [#allocation6], %s494
        %p496 = pneg %p120
        %p497 = pneg %p117
        %s498 = sand.u32 %s29, 1
        %s499 = scalar_lea.sflag [#allocation8], %s498
        %s500 = sand.u32 %s143, 1
        %s501 = smul.addr %s500, 8
        %s502 = scalar_lea.vmem [#allocation7], %s501
        %p503 = pneg %p156
        %p504 = pneg %p153
        %s505 = sand.u32 %s29, 1
        %s506 = scalar_lea.sflag [#allocation8], %s505
        %s507 = sand.u32 %s179, 1
        %s508 = smul.addr %s507, 8
        %s509 = scalar_lea.vmem [#allocation9], %s508
        %p510 = pneg %p192
        %p511 = pneg %p189
        %s512 = sand.u32 %s215, 1
        %s513 = scalar_lea.sflag [#allocation11], %s512
        %s514 = sand.u32 %s215, 1
        %s515 = smul.addr %s514, 8
        %s516 = scalar_lea.vmem [#allocation10], %s515
        %p517 = pneg %p228
        %p518 = pneg %p225
        %p519 = pneg %p256
        %p520 = pneg %p253
        %p521 = scmp.lt.s32.totalorder %s33, 1
        %s522 = scalar_select %p521, %s33, 1
        %p523 = scmp.lt.s32.totalorder %s34, 0
        %s524 = scalar_select %p523, %s34, 0
        %s525 = sadd.s32 %s524, %s522
        %s526 = scalar_lea.vmem %s6, %s525
        %s527 = smul.u32 2, %s34
        %s528 = smul.u32 2, %s34
        %s529 = smul.u32 2, %s34
        %s530 = smul.u32 %s34, 2
        %s531 = ssub.s32 %s530, 1
        %p532 = scmp.gt.s32.totalorder %s531, 0
        %s533 = scalar_select %p532, %s531, 0
        %s534 = smul.u32 %s34, 2
        %s535 = ssub.s32 %s534, 1
        %p536 = scmp.gt.s32.totalorder %s535, 0
        %s537 = scalar_select %p536, %s535, 0
        %s538 = smul.u32 %s34, 2
        %s539 = ssub.s32 %s538, 1
        %p540 = scmp.gt.s32.totalorder %s539, 0
        %s541 = scalar_select %p540, %s539, 0
        %p542 = scmp.lt.s32.totalorder %s33, 1
        %s543 = scalar_select %p542, %s33, 1
        %p544 = scmp.lt.s32.totalorder %s34, 0
        %s545 = scalar_select %p544, %s34, 0
        %s546 = sadd.s32 %s545, %s543
        %s547 = scalar_lea.vmem %s6, %s546
        %p548 = scmp.gt.s32.totalorder %s34, 0
        %v549 = vld [vmem:[%s427] sm:$0xff]
        %v550 = vld [vmem:[%s427 + $0x8] sm:$0xff]
        %553 = vrot.lane.b32.xlu0 %v549, 1
        %v554 = vpop.permute.xlu0 %553
        %555 = vrot.lane.b32.xlu0 %v550, 1
        %v556 = vpop.permute.xlu0 %555
        %vm559 = vcmask 7168
        %v560 = vsel %vm559, 0.0, %v554
        %v561 = vsel %vm559, 0.0, %v556
        %562 = vrot.lane.b32.xlu0 %v549, 127
        %v563 = vpop.permute.xlu0 %562
        %564 = vrot.lane.b32.xlu0 %v550, 127
        %v565 = vpop.permute.xlu0 %564
        %vm568 = vcmask 121856
        %v569 = vsel %vm568, %v563, 0.0
        %v570 = vsel %vm568, %v565, 0.0
        %v571 = vsub.f32 %v569, %v560
        %v572 = vsub.f32 %v570, %v561
        %v573 = vmul.f32 %v549, 2.0
        %v574 = vmul.f32 %v550, 2.0
        %v575 = vadd.f32 %v560, %v573
        %v576 = vadd.f32 %v561, %v574
        %v577 = vadd.f32 %v575, %v569
        %v578 = vadd.f32 %v576, %v570
        %v579 = vld [vmem:[%s454 + $0x6] sm:$0x3]
        %s580 = scalar_select %p548, 1, 0
        %v581 = vstv %s580
        %vm582 = vcmp.eq.s32.totalorder %v581, 1
        %v583 = vsel %vm582, %v579, 0.0
        %585 = vrot.lane.b32.xlu0 %v583, 1
        %v586 = vpop.permute.xlu0 %585
        %v588 = vsel %vm559, 0.0, %v586
        %589 = vrot.lane.b32.xlu0 %v583, 127
        %v590 = vpop.permute.xlu0 %589
        %v592 = vsel %vm568, %v590, 0.0
        %v593 = vsub.f32 %v592, %v588
        %v594 = vmul.f32 %v583, 2.0
        %v595 = vadd.f32 %v588, %v594
        %v596 = vadd.f32 %v595, %v592
        %v597 = vmul.f32 %v593, 2.0
        %v599 = vrot.slane %v597, 1
        %v601 = vadd.f32 %v593, %v599
        %v602 = vadd.f32 %v601, %v571
        %v603 = vand.u32 2147483647, %v602
        %v604 = vsub.f32 %v596, %v577
        %v605 = vand.u32 2147483647, %v604
        %v606 = vadd.f32 %v603, %v605
        %v607 = vmul.f32 %v571, 2.0
        %v609 = vrot.slane %v607, 7
        %v611 = vadd.f32 %v593, %v609
        %v612 = vadd.f32 %v611, %v571
        %v613 = vand.u32 2147483647, %v612
        %v614 = vadd.f32 %v613, %v605
        %v615 = vmul.f32 %v572, 2.0
        %vm617 = vcmask 1046528
        %v618 = vrot.slane %v607, 1
        %v619 = vrot.slane %v615, 1
        %v620 = vsel %vm617, %v618, %v619
        %v623 = vadd.f32 %v571, %v620
        %v624 = vadd.f32 %v572, %v619
        %vm627 = vcmask 1045504
        %v628 = vrot.slane %v571, 2
        %v629 = vrot.slane %v572, 2
        %v630 = vsel %vm627, %v628, %v629
        %v633 = vadd.f32 %v623, %v630
        %v634 = vadd.f32 %v624, %v629
        %v635 = vand.u32 2147483647, %v633
        %v636 = vand.u32 2147483647, %v634
        %v639 = vrot.slane %v577, 2
        %v640 = vrot.slane %v578, 2
        %v641 = vsel %vm627, %v639, %v640
        %v644 = vsub.f32 %v577, %v641
        %v645 = vsub.f32 %v578, %v640
        %v646 = vand.u32 2147483647, %v644
        %v647 = vand.u32 2147483647, %v645
        %v648 = vadd.f32 %v635, %v646
        %v649 = vadd.f32 %v636, %v647
        %v650 = vand.u32 2147483647, %v624
        %v651 = vand.u32 2147483647, %v578
        %v652 = vadd.f32 %v650, %v651
        %v653 = vld [vmem:[%s436] sm:$0xff]
        %v654 = vld [vmem:[%s436 + $0x8] sm:$0xff]
        %657 = vrot.lane.b32.xlu0 %v653, 1
        %v658 = vpop.permute.xlu0 %657
        %659 = vrot.lane.b32.xlu0 %v654, 1
        %v660 = vpop.permute.xlu0 %659
        %v663 = vsel %vm559, 0.0, %v658
        %v664 = vsel %vm559, 0.0, %v660
        %665 = vrot.lane.b32.xlu0 %v653, 127
        %v666 = vpop.permute.xlu0 %665
        %667 = vrot.lane.b32.xlu0 %v654, 127
        %v668 = vpop.permute.xlu0 %667
        %v671 = vsel %vm568, %v666, 0.0
        %v672 = vsel %vm568, %v668, 0.0
        %v673 = vsub.f32 %v671, %v663
        %v674 = vsub.f32 %v672, %v664
        %v675 = vmul.f32 %v653, 2.0
        %v676 = vmul.f32 %v654, 2.0
        %v677 = vadd.f32 %v663, %v675
        %v678 = vadd.f32 %v664, %v676
        %v679 = vadd.f32 %v677, %v671
        %v680 = vadd.f32 %v678, %v672
        %v681 = vld [vmem:[%s463 + $0x6] sm:$0x3]
        %v682 = vsel %vm582, %v681, 0.0
        %684 = vrot.lane.b32.xlu0 %v682, 1
        %v685 = vpop.permute.xlu0 %684
        %v687 = vsel %vm559, 0.0, %v685
        %688 = vrot.lane.b32.xlu0 %v682, 127
        %v689 = vpop.permute.xlu0 %688
        %v691 = vsel %vm568, %v689, 0.0
        %v692 = vsub.f32 %v691, %v687
        %v693 = vmul.f32 %v682, 2.0
        %v694 = vadd.f32 %v687, %v693
        %v695 = vadd.f32 %v694, %v691
        %v696 = vmul.f32 %v692, 2.0
        %v698 = vrot.slane %v696, 1
        %v700 = vadd.f32 %v692, %v698
        %v701 = vadd.f32 %v700, %v673
        %v702 = vand.u32 2147483647, %v701
        %v703 = vsub.f32 %v695, %v679
        %v704 = vand.u32 2147483647, %v703
        %v705 = vadd.f32 %v702, %v704
        %v706 = vmul.f32 %v673, 2.0
        %v708 = vrot.slane %v706, 7
        %v710 = vadd.f32 %v692, %v708
        %v711 = vadd.f32 %v710, %v673
        %v712 = vand.u32 2147483647, %v711
        %v713 = vadd.f32 %v712, %v704
        %v714 = vmul.f32 %v674, 2.0
        %v716 = vrot.slane %v706, 1
        %v717 = vrot.slane %v714, 1
        %v718 = vsel %vm617, %v716, %v717
        %v721 = vadd.f32 %v673, %v718
        %v722 = vadd.f32 %v674, %v717
        %v725 = vrot.slane %v673, 2
        %v726 = vrot.slane %v674, 2
        %v727 = vsel %vm627, %v725, %v726
        %v730 = vadd.f32 %v721, %v727
        %v731 = vadd.f32 %v722, %v726
        %v732 = vand.u32 2147483647, %v730
        %v733 = vand.u32 2147483647, %v731
        %v736 = vrot.slane %v679, 2
        %v737 = vrot.slane %v680, 2
        %v738 = vsel %vm627, %v736, %v737
        %v741 = vsub.f32 %v679, %v738
        %v742 = vsub.f32 %v680, %v737
        %v743 = vand.u32 2147483647, %v741
        %v744 = vand.u32 2147483647, %v742
        %v745 = vadd.f32 %v732, %v743
        %v746 = vadd.f32 %v733, %v744
        %v747 = vand.u32 2147483647, %v722
        %v748 = vand.u32 2147483647, %v680
        %v749 = vadd.f32 %v747, %v748
        %v750 = vld [vmem:[%s445] sm:$0xff]
        %v751 = vld [vmem:[%s445 + $0x8] sm:$0xff]
        %754 = vrot.lane.b32.xlu0 %v750, 1
        %v755 = vpop.permute.xlu0 %754
        %756 = vrot.lane.b32.xlu0 %v751, 1
        %v757 = vpop.permute.xlu0 %756
        %v760 = vsel %vm559, 0.0, %v755
        %v761 = vsel %vm559, 0.0, %v757
        %762 = vrot.lane.b32.xlu0 %v750, 127
        %v763 = vpop.permute.xlu0 %762
        %764 = vrot.lane.b32.xlu0 %v751, 127
        %v765 = vpop.permute.xlu0 %764
        %v768 = vsel %vm568, %v763, 0.0
        %v769 = vsel %vm568, %v765, 0.0
        %v770 = vsub.f32 %v768, %v760
        %v771 = vsub.f32 %v769, %v761
        %v772 = vmul.f32 %v750, 2.0
        %v773 = vmul.f32 %v751, 2.0
        %v774 = vadd.f32 %v760, %v772
        %v775 = vadd.f32 %v761, %v773
        %v776 = vadd.f32 %v774, %v768
        %v777 = vadd.f32 %v775, %v769
        %v778 = vld [vmem:[%s472 + $0x6] sm:$0x3]
        %v779 = vsel %vm582, %v778, 0.0
        %781 = vrot.lane.b32.xlu0 %v779, 1
        %v782 = vpop.permute.xlu0 %781
        %v784 = vsel %vm559, 0.0, %v782
        %785 = vrot.lane.b32.xlu0 %v779, 127
        %v786 = vpop.permute.xlu0 %785
        %v788 = vsel %vm568, %v786, 0.0
        %v789 = vsub.f32 %v788, %v784
        %v790 = vmul.f32 %v779, 2.0
        %v791 = vadd.f32 %v784, %v790
        %v792 = vadd.f32 %v791, %v788
        %v793 = vmul.f32 %v789, 2.0
        %v795 = vrot.slane %v793, 1
        %v797 = vadd.f32 %v789, %v795
        %v798 = vadd.f32 %v797, %v770
        %v799 = vand.u32 2147483647, %v798
        %v800 = vsub.f32 %v792, %v776
        %v801 = vand.u32 2147483647, %v800
        %v802 = vadd.f32 %v799, %v801
        %v803 = vmul.f32 %v770, 2.0
        %v805 = vrot.slane %v803, 7
        %v807 = vadd.f32 %v789, %v805
        %v808 = vadd.f32 %v807, %v770
        %v809 = vand.u32 2147483647, %v808
        %v810 = vadd.f32 %v809, %v801
        %v811 = vmul.f32 %v771, 2.0
        %v813 = vrot.slane %v803, 1
        %v814 = vrot.slane %v811, 1
        %v815 = vsel %vm617, %v813, %v814
        %v818 = vadd.f32 %v770, %v815
        %v819 = vadd.f32 %v771, %v814
        %v822 = vrot.slane %v770, 2
        %v823 = vrot.slane %v771, 2
        %v824 = vsel %vm627, %v822, %v823
        %v827 = vadd.f32 %v818, %v824
        %v828 = vadd.f32 %v819, %v823
        %v829 = vand.u32 2147483647, %v827
        %v830 = vand.u32 2147483647, %v828
        %v833 = vrot.slane %v776, 2
        %v834 = vrot.slane %v777, 2
        %v835 = vsel %vm627, %v833, %v834
        %v838 = vsub.f32 %v776, %v835
        %v839 = vsub.f32 %v777, %v834
        %v840 = vand.u32 2147483647, %v838
        %v841 = vand.u32 2147483647, %v839
        %v842 = vadd.f32 %v829, %v840
        %v843 = vadd.f32 %v830, %v841
        %v844 = vand.u32 2147483647, %v819
        %v845 = vand.u32 2147483647, %v777
        %v846 = vadd.f32 %v844, %v845
        %v847 = vmax.f32 %v648, %v745
        %v848 = vmax.f32 %v649, %v746
        %v849 = vsub.f32 %v847, %v842
        %v850 = vsub.f32 %v848, %v843
        %v851 = vand.u32 2147483647, %v849
        %v852 = vand.u32 2147483647, %v850
        %v853 = vmax.f32 %v614, %v713
        %v854 = vsub.f32 %v853, %v810
        %v855 = vand.u32 2147483647, %v854
        %v856 = vmax.f32 %v606, %v705
        %v857 = vsub.f32 %v856, %v802
        %v858 = vand.u32 2147483647, %v857
        %vm859 = vcmask 130048
        %v860 = vsel %vm859, %v851, 0.0
        %vm861 = vcmask 128000
        %v862 = vsel %vm861, %v852, 0.0
        %v863 = vadd.f32 %v860, %v862
        %864 = vadd.xlane.f32.xlu0 %v863
        %v865 = vpop.xlane.xlu0 %864
        %v866 = vrot.slane %v865, 4
        %v867 = vadd.f32 %v865, %v866
        %v868 = vrot.slane %v867, 2
        %v869 = vadd.f32 %v867, %v868
        %v870 = vrot.slane %v869, 1
        %v871 = vadd.f32 %v869, %v870
        %s872 = vtos %v871
        %v873 = vstv %s872
        %v875 = vrot.slane %v855, 1
        %vm877 = vcmask 122880
        %v878 = vsel %vm877, %v875, 0.0
        %879 = vadd.xlane.f32.xlu0 %v878
        %v880 = vpop.xlane.xlu0 %879
        %v881 = vrot.slane %v880, 4
        %v882 = vadd.f32 %v880, %v881
        %v883 = vrot.slane %v882, 2
        %v884 = vadd.f32 %v882, %v883
        %v885 = vrot.slane %v884, 1
        %v886 = vadd.f32 %v884, %v885
        %s887 = vtos %v886
        %v888 = vstv %s887
        %v889 = vadd.f32 %v873, %v888
        %v890 = vsel %vm877, %v858, 0.0
        %891 = vadd.xlane.f32.xlu0 %v890
        %v892 = vpop.xlane.xlu0 %891
        %v893 = vrot.slane %v892, 4
        %v894 = vadd.f32 %v892, %v893
        %v895 = vrot.slane %v894, 2
        %v896 = vadd.f32 %v894, %v895
        %v897 = vrot.slane %v896, 1
        %v898 = vadd.f32 %v896, %v897
        %s899 = vtos %v898
        %v900 = vstv %s899
        %v901 = vsel %vm582, %v900, 0.0
        %v902 = vadd.f32 %v889, %v901
        %v903 = vmax.f32 %v652, %v749
        %v904 = vsub.f32 %v903, %v846
        %v905 = vand.u32 2147483647, %v904
        %p906 = scmp.eq.s32.totalorder %s34, 0
        %v908 = vrot.slane %v905, 6
        %v910 = vsel %vm877, %v908, 0.0
        %911 = vadd.xlane.f32.xlu0 %v910
        %v912 = vpop.xlane.xlu0 %911
        %v913 = vrot.slane %v912, 4
        %v914 = vadd.f32 %v912, %v913
        %v915 = vrot.slane %v914, 2
        %v916 = vadd.f32 %v914, %v915
        %v917 = vrot.slane %v916, 1
        %v918 = vadd.f32 %v916, %v917
        %s919 = vtos %v918
        %v920 = vstv %s919
        %s921 = scalar_select %p906, 1, 0
        %v922 = vstv %s921
        %vm923 = vcmp.eq.s32.totalorder %v922, 1
        %v924 = vsel %vm923, %v920, 0.0
        %v925 = vadd.f32 %v902, %v924
        %vm926 = vcmask 0
        %927 = vst.msk [vmem:[%s547] sm:$0x1] %vm926, %v925
        %p928 = scmp.lt.s32.totalorder %s33, 1
        %s929 = scalar_select %p928, %s33, 1
        %p930 = scmp.lt.s32.totalorder %s34, 0
        %s931 = scalar_select %p930, %s34, 0
        %s932 = sadd.s32 %s931, %s929
        %s933 = scalar_lea.vmem %s6, %s932
        // Predicated region
        $region69: #{tpu_custom_call.1} parent=43 // pred_check
          %p934 = pneg %p253
        $region70: #{tpu_custom_call.1} parent=43 // pred_check_branch
          %936 = sbr.rel (%p934) target = $region72
        $region71: #{tpu_custom_call.1} parent=43 // pred_region
          _
        $region72: #{tpu_custom_call.1} parent=43 // pred_fallthru
          _
      $region44: #{tpu_custom_call.1} parent=5 // pred_fallthru
        _
      %p937 = scmp.le.s32.totalorder 2, %s24
      // Predicated region
      $region73: #{tpu_custom_call.1} parent=5 // pred_check
        %p938 = pneg %p937
      $region74: #{tpu_custom_call.1} parent=5 // pred_check_branch
        %940 = sbr.rel (%p938) target = $region76
      $region75: #{tpu_custom_call.1} parent=5 // pred_region
        %s941 = ssub.s32 %s24, 2
        // Predicated region
        $region77: #{tpu_custom_call.1} parent=75 // pred_check
          %p942 = pneg %p259
        $region78: #{tpu_custom_call.1} parent=75 // pred_check_branch
          %944 = sbr.rel (%p942) target = $region80
        $region79: #{tpu_custom_call.1} parent=75 // pred_region
          %p945 = scmp.lt.s32.totalorder %s35, 1
          %s946 = scalar_select %p945, %s35, 1
          %p947 = scmp.lt.s32.totalorder %s36, 0
          %s948 = scalar_select %p947, %s36, 0
          %s949 = sadd.s32 %s948, %s946
          %s950 = scalar_lea.vmem %s6, %s949
        $region80: #{tpu_custom_call.1} parent=75 // pred_fallthru
          _
      $region76: #{tpu_custom_call.1} parent=5 // pred_fallthru
        _
    $region6: #{tpu_custom_call.1} parent=1 // loop_footer
      %s28 = sadd.s32 1, %s24
    $region7: #{tpu_custom_call.1} parent=1 // loop_footer_branch
      %23 = sbr.rel target = $region3
    $region8: #{tpu_custom_call.1} parent=1 // loop_exit
      _
    %951 = vsyncpa [#allocation3], 1
    %s952 = scalar_lea.sflag [#allocation3], 1
    %953 = vsyncpa %s952, 1
    %954 = vsyncpa [#allocation5], 1
    %s955 = scalar_lea.sflag [#allocation5], 1
    %956 = vsyncpa %s955, 1
    %957 = vsyncpa [#allocation8], 1
    %s958 = scalar_lea.sflag [#allocation8], 1
    %959 = vsyncpa %s958, 1
    %960 = vsyncpa [#allocation11], 1
    %s961 = scalar_lea.sflag [#allocation11], 1
    %962 = vsyncpa %s961, 1

</llo_original>
